<compile_context>
chip_gen: v7x
topology: tpu7x:2x2x1
jax: 0.10.0
libtpu: 0.0.40
codegen_flags: <defaults>
</compile_context>

<pallas_src>
import jax
import jax.numpy as jnp
from jax.experimental import pallas as pl
from jax.experimental.pallas import tpu as pltpu

_MIB = 1024 * 1024


def _llama_mlp_kernel(x_ref, wg_ref, wu_ref, wd_ref, out_ref, acc_ref):
    """One grid step: (token tile i, out-hidden tile h, intermediate tile k).

    x_ref   : (TM, H)    activation tile (i-only index_map -> reused across h,k)
    wg_ref  : (H, TF)    gate_proj weight slice
    wu_ref  : (H, TF)    up_proj weight slice
    wd_ref  : (TF, TH)   down_proj weight slice
    out_ref : (TM, TH)   output tile (written on the last k)
    acc_ref : (TM, TH)   f32 accumulator scratch (persists across k)
    """
    k = pl.program_id(2)

    @pl.when(k == 0)
    def _init():
        acc_ref[...] = jnp.zeros_like(acc_ref)

    x = x_ref[...]
    # Gate/up projections: contract x's last dim with W's first dim (no
    # transposes), accumulate in f32 on the MXU.
    g = jnp.dot(x, wg_ref[...], preferred_element_type=jnp.float32)
    u = jnp.dot(x, wu_ref[...], preferred_element_type=jnp.float32)

    # SiLU(g) * u in f32.  The approximate reciprocal rides the EUP slot
    # alongside exp instead of a VALU Newton divide sequence.
    act = g * pl.reciprocal(1.0 + jnp.exp(-g), approx=True) * u

    # Partial down-projection for this intermediate tile; accumulate in f32.
    acc_ref[...] += jnp.dot(act.astype(x.dtype), wd_ref[...],
                            preferred_element_type=jnp.float32)

    @pl.when(k == pl.num_programs(2) - 1)
    def _finalize():
        out_ref[...] = acc_ref[...].astype(out_ref.dtype)


def _round_up(n, m):
    return ((n + m - 1) // m) * m


def _pick_divisor_tile(n, target, align):
    """Largest multiple of `align` <= target that divides n, else None."""
    if n <= target:
        return n
    t = (min(target, n) // align) * align
    while t >= align:
        if n % t == 0:
            return t
        t -= align
    return None


def _vmem_working_set(tm, tf, th, H, itemsize):
    """Rough double-buffered VMEM working set of the kernel (bytes)."""
    x_blk = tm * H * itemsize
    gu_blk = 2 * H * tf * itemsize     # gate + up weight tiles
    wd_blk = tf * th * itemsize
    out_blk = tm * th * itemsize
    acc = tm * th * 4                  # f32 accumulator (single buffer)
    return 2 * (x_blk + gu_blk + wd_blk + out_blk) + acc


def llama_mlp(x, gate_w, up_w, down_w, *, compute_dtype=jnp.bfloat16):
    """Pallas TPU implementation of LlamaMLP.forward.

    x      : (B, S, H)
    gate_w : (H, F)   up_w : (H, F)   down_w : (F, H)
    Returns (B, S, H) in x.dtype.
    """
    B, S, H = x.shape
    F = gate_w.shape[1]
    M = B * S
    out_dtype = x.dtype

    # --- bf16 operands into the MXU (biggest single lever on v6e/v7x). ---
    xc = x.reshape(M, H).astype(compute_dtype)
    wg = gate_w.astype(compute_dtype)
    wu = up_w.astype(compute_dtype)
    wd = down_w.astype(compute_dtype)
    itemsize = jnp.dtype(compute_dtype).itemsize

    # --- Generation-aware tile targets / VMEM limit. ---
    try:
        vmem_cap = pltpu.get_tpu_info().vmem_capacity_bytes
    except Exception:                  # conservative fallback
        vmem_cap = 64 * _MIB
    if vmem_cap >= 100 * _MIB:         # v5e / v6e: 128 MiB physical VMEM
        tm_target, tf_target = 1024, 256
        vmem_limit = 100 * _MIB
    else:                              # v7x: 64 MiB per TensorCore
        tm_target, tf_target = 512, 256
        vmem_limit = min(max(vmem_cap - 8 * _MIB, 32 * _MIB), 56 * _MIB)

    # Token tile: multiple of 128 (MXU rows); pad M up rather than falling
    # back to tiny divisors.
    if M >= tm_target:
        tm = tm_target
    elif M >= 128:
        tm = _round_up(M, 128)
    else:
        tm = M                          # full dim -> always a legal block
    M_pad = _round_up(M, tm)

    # Intermediate tile: prefer an exact 128-aligned divisor of F; otherwise
    # pad F with zeros (harmless: silu(0) * 0 == 0 contributes nothing).
    tf = _pick_divisor_tile(F, tf_target, 128)
    if tf is None:
        tf = min(tf_target, _round_up(F, 128))
        F_pad = _round_up(F, tf)
    else:
        F_pad = F

    # Decode / small-M: split the output hidden dim so both TensorCores of a
    # v7x chip get a 'parallel' tile even with a single token tile.
    n_m = M_pad // tm
    if n_m == 1 and H % 256 == 0:
        th = H // 2
    else:
        th = H

    # Shrink tiles until the double-buffered working set fits the budget.
    budget = vmem_limit - 4 * _MIB
    while _vmem_working_set(tm, tf, th, H, itemsize) > budget:
        if tf > 128 and tf % 2 == 0 and F_pad % (tf // 2) == 0:
            tf //= 2
        elif tm > 128 and tm % 2 == 0 and M_pad % (tm // 2) == 0:
            tm //= 2
        else:
            break

    n_m = M_pad // tm
    n_f = F_pad // tf
    n_h = H // th

    if M_pad != M:
        xc = jnp.pad(xc, ((0, M_pad - M), (0, 0)))
    if F_pad != F:
        wg = jnp.pad(wg, ((0, 0), (0, F_pad - F)))
        wu = jnp.pad(wu, ((0, 0), (0, F_pad - F)))
        wd = jnp.pad(wd, ((0, F_pad - F), (0, 0)))

    # CostEstimate: gate/up recomputed once per output-H tile; every token
    # tile re-streams all three weight matrices.
    flops = (2 * n_h + 1) * 2 * M_pad * H * F_pad
    transcendentals = n_h * M_pad * F_pad
    bytes_accessed = itemsize * (
        M_pad * H                              # x
        + M_pad * H                            # out
        + n_m * n_h * 2 * H * F_pad            # gate + up weights, re-streamed
        + n_m * F_pad * H)                     # down weight, re-streamed

    out2 = pl.pallas_call(
        _llama_mlp_kernel,
        out_shape=jax.ShapeDtypeStruct((M_pad, H), out_dtype),
        grid_spec=pltpu.PrefetchScalarGridSpec(
            num_scalar_prefetch=0,
            grid=(n_m, n_h, n_f),
            in_specs=[
                pl.BlockSpec((tm, H), lambda i, h, k: (i, 0)),   # x
                pl.BlockSpec((H, tf), lambda i, h, k: (0, k)),   # gate weight
                pl.BlockSpec((H, tf), lambda i, h, k: (0, k)),   # up weight
                pl.BlockSpec((tf, th), lambda i, h, k: (k, h)),  # down weight
            ],
            out_specs=pl.BlockSpec((tm, th), lambda i, h, k: (i, h)),
            scratch_shapes=[pltpu.VMEM((tm, th), jnp.float32)],
        ),
        compiler_params=pltpu.CompilerParams(
            dimension_semantics=("parallel", "parallel", "arbitrary"),
            vmem_limit_bytes=int(vmem_limit),
        ),
        cost_estimate=pl.CostEstimate(
            flops=int(flops),
            transcendentals=int(transcendentals),
            bytes_accessed=int(bytes_accessed)),
    )(xc, wg, wu, wd)

    if M_pad != M:
        out2 = out2[:M]
    return out2.reshape(B, S, H)


def _reference(x, gate_w, up_w, down_w):
    """Pure-JAX reference mirroring the PyTorch module."""
    g = jnp.einsum("bsh,hf->bsf", x, gate_w)
    u = jnp.einsum("bsh,hf->bsf", x, up_w)
    h = jax.nn.silu(g) * u
    return jnp.einsum("bsf,fh->bsh", h, down_w)


if __name__ == "__main__":
    # Small config consistent with the module: hidden_size=32,
    # intermediate_size=64, batch=2, seq=8, hidden_act="silu".
    B, S, H, F = 2, 8, 32, 64
    key = jax.random.PRNGKey(0)
    kx, kg, ku, kd = jax.random.split(key, 4)

    x = jax.random.normal(kx, (B, S, H), dtype=jnp.float32)
    gate_w = jax.random.normal(kg, (H, F), dtype=jnp.float32) * 0.1
    up_w = jax.random.normal(ku, (H, F), dtype=jnp.float32) * 0.1
    down_w = jax.random.normal(kd, (F, H), dtype=jnp.float32) * 0.1

    out = llama_mlp(x, gate_w, up_w, down_w)
    jax.block_until_ready(out)

    # Dtype-aware check: reference computed in f32 from the same bf16-rounded
    # operands the kernel feeds to the MXU.
    xb = x.astype(jnp.bfloat16).astype(jnp.float32)
    gb = gate_w.astype(jnp.bfloat16).astype(jnp.float32)
    ub = up_w.astype(jnp.bfloat16).astype(jnp.float32)
    db = down_w.astype(jnp.bfloat16).astype(jnp.float32)
    ref = _reference(xb, gb, ub, db)

    assert out.shape == ref.shape, "shape mismatch"
    max_err = float(jnp.max(jnp.abs(out - ref)))
    assert jnp.allclose(out, ref, atol=2e-2, rtol=2e-2), f"mismatch: {max_err}"

    print("KERNEL_OK")
</pallas_src>

<mosaic_0001>
module attributes {stable_mosaic.version = 11 : i64} {
  func.func @_llama_mlp_kernel(%arg0: i32, %arg1: i32, %arg2: i32, %arg3: memref<16x32xbf16, #tpu.memory_space<vmem>>, %arg4: memref<32x64xbf16, #tpu.memory_space<vmem>>, %arg5: memref<32x64xbf16, #tpu.memory_space<vmem>>, %arg6: memref<64x32xbf16, #tpu.memory_space<vmem>>, %arg7: memref<16x32xf32, #tpu.memory_space<vmem>>, %arg8: memref<16x32xf32, #tpu.memory_space<vmem>>) attributes {dimension_semantics = [#tpu.dimension_semantics<parallel>, #tpu.dimension_semantics<parallel>, #tpu.dimension_semantics<arbitrary>], iteration_bounds = array<i64: 1, 1, 1>, scalar_prefetch = 0 : i64, scratch_operands = 1 : i64, tpu.core_type = #tpu.core_type<tc>, window_params = [{transform_indices = @transform_0, window_bounds = array<i64: 16, 32>}, {transform_indices = @transform_1, window_bounds = array<i64: 32, 64>}, {transform_indices = @transform_2, window_bounds = array<i64: 32, 64>}, {transform_indices = @transform_3, window_bounds = array<i64: 64, 32>}, {transform_indices = @transform_4, window_bounds = array<i64: 16, 32>}]} {
    %c0_i32 = arith.constant 0 : i32
    %0 = arith.cmpi eq, %arg2, %c0_i32 : i32
    %1 = arith.extui %0 : i1 to i32
    %c0_i32_0 = arith.constant 0 : i32
    %2 = arith.cmpi ne, %1, %c0_i32_0 : i32
    scf.if %2 {
      %cst_18 = arith.constant 0.000000e+00 : f32
      %25 = vector.broadcast %cst_18 : f32 to vector<16x32xf32>
      %c0_19 = arith.constant 0 : index
      %c0_20 = arith.constant 0 : index
      %26 = vector.load %arg8[%c0_19, %c0_20] : memref<16x32xf32, #tpu.memory_space<vmem>>, vector<16x32xf32>
      tpu.vector_store %arg8[%c0_19, %c0_20], %25 {strides = array<i32>} : memref<16x32xf32, #tpu.memory_space<vmem>>, vector<16x32xf32>,
    } else {
    }
    %c0 = arith.constant 0 : index
    %c0_1 = arith.constant 0 : index
    %3 = vector.load %arg3[%c0, %c0_1] : memref<16x32xbf16, #tpu.memory_space<vmem>>, vector<16x32xbf16>
    %c0_2 = arith.constant 0 : index
    %c0_3 = arith.constant 0 : index
    %4 = vector.load %arg4[%c0_2, %c0_3] : memref<32x64xbf16, #tpu.memory_space<vmem>>, vector<32x64xbf16>
    %cst = arith.constant dense<0.000000e+00> : vector<16x64xf32>
    %5 = tpu.matmul %3, %4, %cst {dimension_numbers = #tpu.dot_dimension_numbers<[1], [0], [0], [1], [0, 0, 1, 1], [], []>} : vector<16x32xbf16>, vector<32x64xbf16>, vector<16x64xf32> -> vector<16x64xf32>
    %c0_4 = arith.constant 0 : index
    %c0_5 = arith.constant 0 : index
    %6 = vector.load %arg5[%c0_4, %c0_5] : memref<32x64xbf16, #tpu.memory_space<vmem>>, vector<32x64xbf16>
    %cst_6 = arith.constant dense<0.000000e+00> : vector<16x64xf32>
    %7 = tpu.matmul %3, %6, %cst_6 {dimension_numbers = #tpu.dot_dimension_numbers<[1], [0], [0], [1], [0, 0, 1, 1], [], []>} : vector<16x32xbf16>, vector<32x64xbf16>, vector<16x64xf32> -> vector<16x64xf32>
    %cst_7 = arith.constant 0.000000e+00 : f32
    %8 = vector.broadcast %cst_7 : f32 to vector<16x64xf32>
    %9 = arith.subf %8, %5 : vector<16x64xf32>
    %10 = math.exp %9 : vector<16x64xf32>
    %cst_8 = arith.constant 1.000000e+00 : f32
    %11 = vector.broadcast %cst_8 : f32 to vector<16x64xf32>
    %12 = arith.addf %11, %10 : vector<16x64xf32>
    %13 = tpu.reciprocal %12 {approx = true} : vector<16x64xf32> -> vector<16x64xf32>
    %14 = arith.mulf %5, %13 : vector<16x64xf32>
    %15 = arith.mulf %14, %7 : vector<16x64xf32>
    %c0_9 = arith.constant 0 : index
    %c0_10 = arith.constant 0 : index
    %16 = vector.load %arg8[%c0_9, %c0_10] : memref<16x32xf32, #tpu.memory_space<vmem>>, vector<16x32xf32>
    %17 = arith.truncf %15 : vector<16x64xf32> to vector<16x64xbf16>
    %c0_11 = arith.constant 0 : index
    %c0_12 = arith.constant 0 : index
    %18 = vector.load %arg6[%c0_11, %c0_12] : memref<64x32xbf16, #tpu.memory_space<vmem>>, vector<64x32xbf16>
    %cst_13 = arith.constant dense<0.000000e+00> : vector<16x32xf32>
    %19 = tpu.matmul %17, %18, %cst_13 {dimension_numbers = #tpu.dot_dimension_numbers<[1], [0], [0], [1], [0, 0, 1, 1], [], []>} : vector<16x64xbf16>, vector<64x32xbf16>, vector<16x32xf32> -> vector<16x32xf32>
    %20 = arith.addf %16, %19 : vector<16x32xf32>
    %c0_14 = arith.constant 0 : index
    %c0_15 = arith.constant 0 : index
    %21 = vector.load %arg8[%c0_14, %c0_15] : memref<16x32xf32, #tpu.memory_space<vmem>>, vector<16x32xf32>
    tpu.vector_store %arg8[%c0_14, %c0_15], %20 {strides = array<i32>} : memref<16x32xf32, #tpu.memory_space<vmem>>, vector<16x32xf32>,
    %c0_i32_16 = arith.constant 0 : i32
    %22 = arith.cmpi eq, %arg2, %c0_i32_16 : i32
    %23 = arith.extui %22 : i1 to i32
    %c0_i32_17 = arith.constant 0 : i32
    %24 = arith.cmpi ne, %23, %c0_i32_17 : i32
    scf.if %24 {
      %c0_18 = arith.constant 0 : index
      %c0_19 = arith.constant 0 : index
      %25 = vector.load %arg8[%c0_18, %c0_19] : memref<16x32xf32, #tpu.memory_space<vmem>>, vector<16x32xf32>
      %c0_20 = arith.constant 0 : index
      %c0_21 = arith.constant 0 : index
      %26 = vector.load %arg7[%c0_20, %c0_21] : memref<16x32xf32, #tpu.memory_space<vmem>>, vector<16x32xf32>
      tpu.vector_store %arg7[%c0_20, %c0_21], %25 {strides = array<i32>} : memref<16x32xf32, #tpu.memory_space<vmem>>, vector<16x32xf32>,
    } else {
    }
    return
  }
  func.func @transform_0(%arg0: i32, %arg1: i32, %arg2: i32) -> (i32, i32) {
    %c0_i32 = arith.constant 0 : i32
    %c0_i32_0 = arith.constant 0 : i32
    return %arg0, %c0_i32 : i32, i32
  }
  func.func @transform_1(%arg0: i32, %arg1: i32, %arg2: i32) -> (i32, i32) {
    %c0_i32 = arith.constant 0 : i32
    %c0_i32_0 = arith.constant 0 : i32
    return %c0_i32, %arg2 : i32, i32
  }
  func.func @transform_2(%arg0: i32, %arg1: i32, %arg2: i32) -> (i32, i32) {
    %c0_i32 = arith.constant 0 : i32
    %c0_i32_0 = arith.constant 0 : i32
    return %c0_i32, %arg2 : i32, i32
  }
  func.func @transform_3(%arg0: i32, %arg1: i32, %arg2: i32) -> (i32, i32) {
    %c0_i32 = arith.constant 0 : i32
    return %arg2, %arg1 : i32, i32
  }
  func.func @transform_4(%arg0: i32, %arg1: i32, %arg2: i32) -> (i32, i32) {
    %c0_i32 = arith.constant 0 : i32
    return %arg0, %arg1 : i32, i32
  }
}

</mosaic_0001>

<llo_original>
// kernel: tpu_custom_call.1
$region0: #{tpu_custom_call.1}
  #allocation0 [shape = 'u32[]', space=smem, size = 0x4, offset = 0x4, fixed_abs, tag = 'smem constant byte address 0x4 - core index']
  #allocation1 [shape = 'u32[144,128]{1,0:T(1,128)}', space=vmem, size = 0x12000, scoped, tag = 'internal scratch']
  #allocation2 [shape = 'f32[16,32]{1,0:T(8,128)}', space=vmem, size = 0x2000, scoped, tag = 'scratch operand']
  %s0 = inlined_call_operand.vmem [shape: bf16[16,32], index: 0, kind: input, shape index: {}]
  %s1 = inlined_call_operand.vmem [shape: bf16[32,64], index: 1, kind: input, shape index: {}]
  %s2 = inlined_call_operand.vmem [shape: bf16[32,64], index: 2, kind: input, shape index: {}]
  %s3 = inlined_call_operand.vmem [shape: bf16[64,32], index: 3, kind: input, shape index: {}]
  %s4 = inlined_call_operand.hbm [shape: f32[16,32], index: 4, kind: output, shape index: {}]
  %s5 = sld [smem:[#allocation0]]
  $region34: #{tpu_custom_call.1} parent=0
    _
  %s7 = ssub.s32 1, %s5
  %s8 = scalar_select 0, %s7, %s5
  $region1: #{tpu_custom_call.1} parent=0
    #allocation3 [shape = 'u8[8192]{0}', space=vmem, size = 0x2000, scoped, tag = 'output window, operand 0, single buffered']
    #allocation4 [shape = 's32[1]{0}', space=sflag, size = 0x4, scoped, tag = 'scoped memory for tpu_custom_call.1']
    %9 = vsyncpa [#allocation4], 0
    // Predicated region
    $region2: #{tpu_custom_call.1} parent=1 // pred_check
      _
    $region3: #{tpu_custom_call.1} parent=1 // pred_check_branch
      %11 = sbr.rel (0) target = $region5
    $region4: #{tpu_custom_call.1} parent=1 // pred_region
      _
    $region5: #{tpu_custom_call.1} parent=1 // pred_fallthru
      _
    // Predicated region
    $region6: #{tpu_custom_call.1} parent=1 // pred_check
      _
    $region7: #{tpu_custom_call.1} parent=1 // pred_check_branch
      %13 = sbr.rel (0) target = $region9
    $region8: #{tpu_custom_call.1} parent=1 // pred_region
      _
    $region9: #{tpu_custom_call.1} parent=1 // pred_fallthru
      _
    // Predicated region
    $region10: #{tpu_custom_call.1} parent=1 // pred_check
      _
    $region11: #{tpu_custom_call.1} parent=1 // pred_check_branch
      %15 = sbr.rel (0) target = $region13
    $region12: #{tpu_custom_call.1} parent=1 // pred_region
      _
    $region13: #{tpu_custom_call.1} parent=1 // pred_fallthru
      _
    // Predicated region
    $region14: #{tpu_custom_call.1} parent=1 // pred_check
      _
    $region15: #{tpu_custom_call.1} parent=1 // pred_check_branch
      %17 = sbr.rel (0) target = $region17
    $region16: #{tpu_custom_call.1} parent=1 // pred_region
      _
    $region17: #{tpu_custom_call.1} parent=1 // pred_fallthru
      _
    %p19 = scmp.eq.s32.totalorder 0, 0
    // Predicated region
    $region18: #{tpu_custom_call.1} parent=1 // pred_check
      %p20 = pneg %p19
    $region19: #{tpu_custom_call.1} parent=1 // pred_check_branch
      %22 = sbr.rel (%p20) target = $region21
    $region20: #{tpu_custom_call.1} parent=1 // pred_region
      %vm23 = vcmask 261120
      %24 = vst.msk [vmem:[#allocation2] sm:$0xff] %vm23, 0.0
      %25 = vst.msk [vmem:[#allocation2 + $0x8] sm:$0xff] %vm23, 0.0
    $region21: #{tpu_custom_call.1} parent=1 // pred_fallthru
      _
    %v26 = vld [vmem:[%s0] sm:$0xf]
    %v27 = vld [vmem:[%s0 + $0x4] sm:$0xf]
    %v28 = vld [vmem:[%s1] sm:$0xf]
    %v29 = vld [vmem:[%s1 + $0x4] sm:$0xf]
    %v30 = vld [vmem:[%s1 + $0x8] sm:$0xf]
    %v31 = vld [vmem:[%s1 + $0xc] sm:$0xf]
    %v34 = vunpack.c.l.b16 %v26
    %v35 = vunpack.c.l.b16 %v27
    %v36 = vpack.c.b16 %v35, %v34
    %v41 = vunpack.c.l.b16 %v28
    %v42 = vunpack.c.l.b16 %v29
    %v43 = vunpack.c.l.b16 %v30
    %v44 = vunpack.c.l.b16 %v31
    %v45 = vpack.c.b16 %v42, %v41
    %v46 = vpack.c.b16 %v44, %v43
    %vm49 = vcmask 261120
    %v51 = vsel %vm49, %v36, 0
    %53 = vmatprep.subr.bf16.mxu0 0
    %54 = vmatpush1.bf16.msra.mxu0 %v45
    %55 = vmatprep.subr.bf16.mxu0 0
    %56 = vmatpush1.bf16.msra.mxu0 %v46
    %57 = vmatprep.subr.bf16.mxu0 0
    %58 = vmatpush1.bf16.msra.mxu0 0
    %59 = vmatprep.subr.bf16.mxu0 0
    %60 = vmatpush1.bf16.msra.mxu0 0
    %61 = vmatprep.subr.bf16.mxu0 0
    %62 = vmatpush1.bf16.msra.mxu0 0
    %63 = vmatprep.subr.bf16.mxu0 0
    %64 = vmatpush1.bf16.msra.mxu0 0
    %65 = vmatprep.subr.bf16.mxu0 0
    %66 = vmatpush1.bf16.msra.mxu0 0
    %67 = vmatprep.subr.bf16.mxu0 0
    %68 = vmatpush1.bf16.msra.mxu0 0
    %69 = vmatprep.subr.bf16.mxu0 0
    %70 = vmatpush1.bf16.msra.mxu0 0
    %71 = vmatprep.subr.bf16.mxu0 0
    %72 = vmatpush1.bf16.msra.mxu0 0
    %73 = vmatprep.subr.bf16.mxu0 0
    %74 = vmatpush1.bf16.msra.mxu0 0
    %75 = vmatprep.subr.bf16.mxu0 0
    %76 = vmatpush1.bf16.msra.mxu0 0
    %77 = vmatprep.subr.bf16.mxu0 0
    %78 = vmatpush1.bf16.msra.mxu0 0
    %79 = vmatprep.subr.bf16.mxu0 0
    %80 = vmatpush1.bf16.msra.mxu0 0
    %81 = vmatprep.subr.bf16.mxu0 0
    %82 = vmatpush1.bf16.msra.mxu0 0
    %83 = vmatprep.subr.bf16.mxu0 0
    %84 = vmatpush1.bf16.msra.mxu0 0
    %85 = vmatprep.mubr.bf16.mxu0 0
    %86 = vmatmul.mubr.bf16.gmra.mrb[0].mxu0 %v51
    %v87 = vpop.f32.mrb[0].mxu0
    %v88 = vadd.f32 0.0, %v87
    %v89 = vpop.f32.mrb[0].mxu0
    %v90 = vpop.f32.mrb[0].mxu0
    %v91 = vadd.f32 0.0, %v90
    %v92 = vpop.f32.mrb[0].mxu0
    %93 = vdwg.mxu0
    %v94 = vld [vmem:[%s2] sm:$0xf]
    %v95 = vld [vmem:[%s2 + $0x4] sm:$0xf]
    %v96 = vld [vmem:[%s2 + $0x8] sm:$0xf]
    %v97 = vld [vmem:[%s2 + $0xc] sm:$0xf]
    %v102 = vunpack.c.l.b16 %v94
    %v103 = vunpack.c.l.b16 %v95
    %v104 = vunpack.c.l.b16 %v96
    %v105 = vunpack.c.l.b16 %v97
    %v106 = vpack.c.b16 %v103, %v102
    %v107 = vpack.c.b16 %v105, %v104
    %110 = vmatprep.subr.bf16.mxu0 0
    %111 = vmatpush1.bf16.msra.mxu0 %v106
    %112 = vmatprep.subr.bf16.mxu0 0
    %113 = vmatpush1.bf16.msra.mxu0 %v107
    %114 = vmatprep.subr.bf16.mxu0 0
    %115 = vmatpush1.bf16.msra.mxu0 0
    %116 = vmatprep.subr.bf16.mxu0 0
    %117 = vmatpush1.bf16.msra.mxu0 0
    %118 = vmatprep.subr.bf16.mxu0 0
    %119 = vmatpush1.bf16.msra.mxu0 0
    %120 = vmatprep.subr.bf16.mxu0 0
    %121 = vmatpush1.bf16.msra.mxu0 0
    %122 = vmatprep.subr.bf16.mxu0 0
    %123 = vmatpush1.bf16.msra.mxu0 0
    %124 = vmatprep.subr.bf16.mxu0 0
    %125 = vmatpush1.bf16.msra.mxu0 0
    %126 = vmatprep.subr.bf16.mxu0 0
    %127 = vmatpush1.bf16.msra.mxu0 0
    %128 = vmatprep.subr.bf16.mxu0 0
    %129 = vmatpush1.bf16.msra.mxu0 0
    %130 = vmatprep.subr.bf16.mxu0 0
    %131 = vmatpush1.bf16.msra.mxu0 0
    %132 = vmatprep.subr.bf16.mxu0 0
    %133 = vmatpush1.bf16.msra.mxu0 0
    %134 = vmatprep.subr.bf16.mxu0 0
    %135 = vmatpush1.bf16.msra.mxu0 0
    %136 = vmatprep.subr.bf16.mxu0 0
    %137 = vmatpush1.bf16.msra.mxu0 0
    %138 = vmatprep.subr.bf16.mxu0 0
    %139 = vmatpush1.bf16.msra.mxu0 0
    %140 = vmatprep.subr.bf16.mxu0 0
    %141 = vmatpush1.bf16.msra.mxu0 0
    %142 = vmatprep.mubr.bf16.mxu0 0
    %143 = vmatmul.mubr.bf16.gmra.mrb[0].mxu0 %v51
    %v144 = vpop.f32.mrb[0].mxu0
    %v145 = vadd.f32 0.0, %v144
    %v146 = vpop.f32.mrb[0].mxu0
    %v147 = vpop.f32.mrb[0].mxu0
    %v148 = vadd.f32 0.0, %v147
    %v149 = vpop.f32.mrb[0].mxu0
    %150 = vdwg.mxu0
    %v151 = vsub.f32 0.0, %v88
    %v152 = vsub.f32 0.0, %v91
    %v153 = vmul.f32 %v151, 1.442695
    %v154 = vpow.pop %v153
    %v155 = vmul.f32 %v152, 1.442695
    %v156 = vpow.pop %v155
    %v157 = vadd.f32 %v154, 1.0
    %v158 = vadd.f32 %v156, 1.0
    %v159 = vrcp.pop %v157
    %v160 = vrcp.pop %v158
    %v161 = vmul.f32 %v88, %v159
    %v162 = vmul.f32 %v91, %v160
    %v163 = vmul.f32 %v161, %v145
    %v164 = vmul.f32 %v162, %v148
    %v165 = vld [vmem:[#allocation2] sm:$0xff]
    %v166 = vld [vmem:[#allocation2 + $0x8] sm:$0xff]
    %v167 = vpack.c.bf16 %v164, %v163
    %v168 = vld [vmem:[%s3] sm:$0xf]
    %v169 = vld [vmem:[%s3 + $0x4] sm:$0xf]
    %v170 = vld [vmem:[%s3 + $0x8] sm:$0xf]
    %v171 = vld [vmem:[%s3 + $0xc] sm:$0xf]
    %v172 = vld [vmem:[%s3 + $0x10] sm:$0xf]
    %v173 = vld [vmem:[%s3 + $0x14] sm:$0xf]
    %v174 = vld [vmem:[%s3 + $0x18] sm:$0xf]
    %v175 = vld [vmem:[%s3 + $0x1c] sm:$0xf]
    %v184 = vunpack.c.l.b16 %v168
    %v185 = vunpack.c.l.b16 %v169
    %v186 = vunpack.c.l.b16 %v170
    %v187 = vunpack.c.l.b16 %v171
    %v188 = vunpack.c.l.b16 %v172
    %v189 = vunpack.c.l.b16 %v173
    %v190 = vunpack.c.l.b16 %v174
    %v191 = vunpack.c.l.b16 %v175
    %v192 = vpack.c.b16 %v185, %v184
    %v193 = vpack.c.b16 %v187, %v186
    %v194 = vpack.c.b16 %v189, %v188
    %v195 = vpack.c.b16 %v191, %v190
    %vm200 = vcmask 523264
    %v202 = vsel %vm200, %v167, 0
    %204 = vmatprep.subr.bf16.mxu0 0
    %205 = vmatpush1.bf16.msra.mxu0 %v192
    %206 = vmatprep.subr.bf16.mxu0 0
    %207 = vmatpush1.bf16.msra.mxu0 %v193
    %208 = vmatprep.subr.bf16.mxu0 0
    %209 = vmatpush1.bf16.msra.mxu0 %v194
    %210 = vmatprep.subr.bf16.mxu0 0
    %211 = vmatpush1.bf16.msra.mxu0 %v195
    %212 = vmatprep.subr.bf16.mxu0 0
    %213 = vmatpush1.bf16.msra.mxu0 0
    %214 = vmatprep.subr.bf16.mxu0 0
    %215 = vmatpush1.bf16.msra.mxu0 0
    %216 = vmatprep.subr.bf16.mxu0 0
    %217 = vmatpush1.bf16.msra.mxu0 0
    %218 = vmatprep.subr.bf16.mxu0 0
    %219 = vmatpush1.bf16.msra.mxu0 0
    %220 = vmatprep.subr.bf16.mxu0 0
    %221 = vmatpush1.bf16.msra.mxu0 0
    %222 = vmatprep.subr.bf16.mxu0 0
    %223 = vmatpush1.bf16.msra.mxu0 0
    %224 = vmatprep.subr.bf16.mxu0 0
    %225 = vmatpush1.bf16.msra.mxu0 0
    %226 = vmatprep.subr.bf16.mxu0 0
    %227 = vmatpush1.bf16.msra.mxu0 0
    %228 = vmatprep.subr.bf16.mxu0 0
    %229 = vmatpush1.bf16.msra.mxu0 0
    %230 = vmatprep.subr.bf16.mxu0 0
    %231 = vmatpush1.bf16.msra.mxu0 0
    %232 = vmatprep.subr.bf16.mxu0 0
    %233 = vmatpush1.bf16.msra.mxu0 0
    %234 = vmatprep.subr.bf16.mxu0 0
    %235 = vmatpush1.bf16.msra.mxu0 0
    %236 = vmatprep.mubr.bf16.mxu0 0
    %237 = vmatmul.mubr.bf16.gmra.mrb[0].mxu0 %v202
    %v238 = vpop.f32.mrb[0].mxu0
    %v239 = vadd.f32 0.0, %v238
    %v240 = vpop.f32.mrb[0].mxu0
    %v241 = vpop.f32.mrb[0].mxu0
    %v242 = vadd.f32 0.0, %v241
    %v243 = vpop.f32.mrb[0].mxu0
    %244 = vdwg.mxu0
    %v245 = vadd.f32 %v165, %v239
    %v246 = vadd.f32 %v166, %v242
    %247 = vst.msk [vmem:[#allocation2] sm:$0xff] %vm49, %v245
    %248 = vst.msk [vmem:[#allocation2 + $0x8] sm:$0xff] %vm49, %v246
    // Predicated region
    $region22: #{tpu_custom_call.1} parent=1 // pred_check
      %p249 = pneg %p19
    $region23: #{tpu_custom_call.1} parent=1 // pred_check_branch
      %251 = sbr.rel (%p249) target = $region25
    $region24: #{tpu_custom_call.1} parent=1 // pred_region
      %v252 = vld [vmem:[#allocation2] sm:$0xff]
      %v253 = vld [vmem:[#allocation2 + $0x8] sm:$0xff]
      %254 = vst.msk [vmem:[#allocation3] sm:$0xff] %vm49, %v252
      %255 = vst.msk [vmem:[#allocation3 + $0x8] sm:$0xff] %vm49, %v253
    $region25: #{tpu_custom_call.1} parent=1 // pred_fallthru
      _
    // Predicated region
    $region26: #{tpu_custom_call.1} parent=1 // pred_check
      _
    $region27: #{tpu_custom_call.1} parent=1 // pred_check_branch
      %257 = sbr.rel (0) target = $region29
    $region28: #{tpu_custom_call.1} parent=1 // pred_region
      %s259 = ssub.s32 256, 256
      %260 = vsyncadd [#allocation4], %s259
      %s261 = sshll.u32 [#allocation3], 4
      %s262 = int_to_ptr.vmem [resolvable:$true] %s261
      %267 = dma.vmem_to_hbm [thread:$0]  %s262, 256, %s4, [#allocation4], 128, 128, 8
    $region29: #{tpu_custom_call.1} parent=1 // pred_fallthru
      _
    // Predicated region
    $region30: #{tpu_custom_call.1} parent=1 // pred_check
      _
    $region31: #{tpu_custom_call.1} parent=1 // pred_check_branch
      %269 = sbr.rel (0) target = $region33
    $region32: #{tpu_custom_call.1} parent=1 // pred_region
      %270 = dma.done [#allocation4], 256
    $region33: #{tpu_custom_call.1} parent=1 // pred_fallthru
      _
    %271 = vsyncpa [#allocation4], 1

</llo_original>
